<compile_context>
chip_gen: v7x
topology: tpu7x:2x2x1
jax: 0.10.0
libtpu: 0.0.40
codegen_flags: <defaults>
</compile_context>

<pallas_src>
import jax
import jax.numpy as jnp
from jax.experimental import pallas as pl
from jax.experimental.pallas import tpu as pltpu


def _swiglu_kernel(x_ref, ws_ref, wg_ref, bs_ref, bg_ref, o_ref):
    # x_ref: (TM, D)   ws_ref/wg_ref: (D, TH)   bs_ref/bg_ref: (1, TH)
    # o_ref: (TM, TH)
    x = x_ref[...]  # keep model dtype (bf16 MXU fast path when inputs are bf16)
    swish = jnp.dot(x, ws_ref[...], preferred_element_type=jnp.float32)
    swish = swish + bs_ref[...].astype(jnp.float32)
    gate = jnp.dot(x, wg_ref[...], preferred_element_type=jnp.float32)
    gate = gate + bg_ref[...].astype(jnp.float32)
    # SiLU in f32; sigmoid goes to the EUP slot, essentially free under the MXU.
    o_ref[...] = (swish * jax.nn.sigmoid(swish) * gate).astype(o_ref.dtype)


def _round_up(v, m):
    return (v + m - 1) // m * m


def _largest_aligned_divisor(total, target, align):
    """Largest multiple of `align` that divides `total` and is <= max(target, align)."""
    best = align
    t = align
    limit = min(max(target, align), total)
    while t <= limit:
        if total % t == 0:
            best = t
        t += align
    return best


def swiglu(x, w, b, *, tm_target=512, th_target=512):
    """x: (B, S, D); w: (D, 8D) (PyTorch fc.weight transposed); b: (8D,)."""
    B, S, D = x.shape
    H2 = w.shape[1]
    H = H2 // 2                      # SwiGLU output width (= 4 * embed_dim)
    M = B * S

    x2 = x.reshape(M, D)

    # ---- H tiling: address the two halves of w in place when possible ----
    if H % 128 == 0:
        TH = _largest_aligned_divisor(H, th_target, 128)
        H_pad = H
        gate_off = H // TH           # gate half starts this many column-blocks in
        ws_arr = wg_arr = w          # same HBM buffer, two BlockSpecs
        b2 = b.reshape(1, H2)
        bs_arr = bg_arr = b2
        w_bytes_read = w.size * w.dtype.itemsize
        b_bytes_read = b2.size * b2.dtype.itemsize
    else:
        # Rare fallback (embed_dim not a multiple of 32): split + pad halves.
        H_pad = _round_up(H, 128)
        TH = _largest_aligned_divisor(H_pad, th_target, 128)
        gate_off = 0
        pad = H_pad - H
        ws_arr = jnp.pad(w[:, :H], ((0, 0), (0, pad)))
        wg_arr = jnp.pad(w[:, H:], ((0, 0), (0, pad)))
        bs_arr = jnp.pad(b[:H], (0, pad)).reshape(1, H_pad)
        bg_arr = jnp.pad(b[H:], (0, pad)).reshape(1, H_pad)
        w_bytes_read = (ws_arr.size + wg_arr.size) * w.dtype.itemsize
        b_bytes_read = (bs_arr.size + bg_arr.size) * b.dtype.itemsize

    # ---- M tiling: rows 8-aligned; skip padding/slicing when they divide ----
    TM = min(tm_target, _round_up(M, 8))
    M_pad = _round_up(M, TM)
    if M_pad != M:
        x2 = jnp.pad(x2, ((0, M_pad - M), (0, 0)))

    h_tiles = H_pad // TH
    m_tiles = M_pad // TM

    # ---- VMEM budget -> vmem_limit_bytes (safe for v7x's 64 MiB per TC) ----
    xi = x.dtype.itemsize
    wi = w.dtype.itemsize
    bi = b.dtype.itemsize
    budget = (
        2 * TM * D * xi            # streamed x tile, double-buffered
        + 2 * 2 * D * TH * wi      # two resident weight tiles (2 buffers each)
        + 2 * 2 * TH * bi          # bias tiles
        + 2 * TM * TH * xi         # output tile, double-buffered
        + 3 * TM * TH * 4          # f32 intermediates (swish/gate/sigmoid)
    )
    vmem_limit = int(min(56 << 20, max(16 << 20, budget * 13 // 10 + (2 << 20))))

    cost = pl.CostEstimate(
        flops=2 * M * D * H2,
        transcendentals=M * H,
        bytes_accessed=(
            x2.size * x2.dtype.itemsize * h_tiles   # x streamed once per H tile
            + w_bytes_read                          # weights read exactly once
            + b_bytes_read
            + M_pad * H_pad * x.dtype.itemsize      # output written once
        ),
    )

    out = pl.pallas_call(
        _swiglu_kernel,
        out_shape=jax.ShapeDtypeStruct((M_pad, H_pad), x.dtype),
        grid_spec=pltpu.PrefetchScalarGridSpec(
            num_scalar_prefetch=0,
            # H is the outer (megacore-shardable) axis; M is the inner streamed axis.
            grid=(h_tiles, m_tiles),
            in_specs=[
                pl.BlockSpec((TM, D), lambda j, i: (i, 0)),                    # x (streamed)
                pl.BlockSpec((D, TH), lambda j, i: (0, j)),                    # swish weights (resident)
                pl.BlockSpec((D, TH), lambda j, i, o=gate_off: (0, j + o)),    # gate weights (resident)
                pl.BlockSpec((1, TH), lambda j, i: (0, j)),                    # swish bias
                pl.BlockSpec((1, TH), lambda j, i, o=gate_off: (0, j + o)),    # gate bias
            ],
            out_specs=pl.BlockSpec((TM, TH), lambda j, i: (i, j)),
        ),
        compiler_params=pltpu.CompilerParams(
            dimension_semantics=("parallel", "parallel"),
            vmem_limit_bytes=vmem_limit,
        ),
        cost_estimate=cost,
    )(x2, ws_arr, wg_arr, bs_arr, bg_arr)

    if M_pad != M or H_pad != H:
        out = out[:M, :H]
    return out.reshape(B, S, H)


def _reference(x, w, b):
    out = x @ w + b
    H = out.shape[-1] // 2
    swish, gate = out[..., :H], out[..., H:]
    return jax.nn.silu(swish) * gate


if __name__ == "__main__":
    # Small config consistent with the module: batch=2, seq=8, embed_dim=32.
    B, S, D = 2, 8, 32
    H2 = 8 * D  # Linear output width; SwiGLU output width is H2 // 2 = 4*D

    key = jax.random.PRNGKey(0)
    kx, kw, kb = jax.random.split(key, 3)

    x = jax.random.normal(kx, (B, S, D), dtype=jnp.float32)
    w = 0.02 * jax.random.normal(kw, (D, H2), dtype=jnp.float32)   # fc.weight.T
    b = 0.01 * jax.random.normal(kb, (H2,), dtype=jnp.float32)     # fc.bias

    out = swiglu(x, w, b)
    out = jax.block_until_ready(out)

    ref = _reference(x, w, b)
    assert out.shape == (B, S, H2 // 2)
    assert jnp.allclose(out, ref, atol=1e-5, rtol=1e-5)

    print("KERNEL_OK")
</pallas_src>

<mosaic_0001>
module attributes {stable_mosaic.version = 11 : i64} {
  func.func @_swiglu_kernel(%arg0: i32, %arg1: i32, %arg2: memref<16x32xf32, #tpu.memory_space<vmem>>, %arg3: memref<32x128xf32, #tpu.memory_space<vmem>>, %arg4: memref<32x128xf32, #tpu.memory_space<vmem>>, %arg5: memref<1x128xf32, #tpu.memory_space<vmem>>, %arg6: memref<1x128xf32, #tpu.memory_space<vmem>>, %arg7: memref<16x128xf32, #tpu.memory_space<vmem>>) attributes {dimension_semantics = [#tpu.dimension_semantics<parallel>, #tpu.dimension_semantics<parallel>], iteration_bounds = array<i64: 1, 1>, scalar_prefetch = 0 : i64, scratch_operands = 0 : i64, tpu.core_type = #tpu.core_type<tc>, window_params = [{transform_indices = @transform_0, window_bounds = array<i64: 16, 32>}, {transform_indices = @transform_1, window_bounds = array<i64: 32, 128>}, {transform_indices = @transform_2, window_bounds = array<i64: 32, 128>}, {transform_indices = @transform_3, window_bounds = array<i64: 1, 128>}, {transform_indices = @transform_4, window_bounds = array<i64: 1, 128>}, {transform_indices = @transform_5, window_bounds = array<i64: 16, 128>}]} {
    %c0 = arith.constant 0 : index
    %c0_0 = arith.constant 0 : index
    %0 = vector.load %arg2[%c0, %c0_0] : memref<16x32xf32, #tpu.memory_space<vmem>>, vector<16x32xf32>
    %c0_1 = arith.constant 0 : index
    %c0_2 = arith.constant 0 : index
    %1 = vector.load %arg3[%c0_1, %c0_2] : memref<32x128xf32, #tpu.memory_space<vmem>>, vector<32x128xf32>
    %cst = arith.constant dense<0.000000e+00> : vector<16x128xf32>
    %2 = tpu.matmul %0, %1, %cst {dimension_numbers = #tpu.dot_dimension_numbers<[1], [0], [0], [1], [0, 0, 1, 1], [], []>} : vector<16x32xf32>, vector<32x128xf32>, vector<16x128xf32> -> vector<16x128xf32>
    %c0_3 = arith.constant 0 : index
    %c0_4 = arith.constant 0 : index
    %3 = vector.load %arg5[%c0_3, %c0_4] : memref<1x128xf32, #tpu.memory_space<vmem>>, vector<1x128xf32>
    %4 = vector.broadcast %3 : vector<1x128xf32> to vector<16x128xf32>
    %5 = arith.addf %2, %4 : vector<16x128xf32>
    %c0_5 = arith.constant 0 : index
    %c0_6 = arith.constant 0 : index
    %6 = vector.load %arg4[%c0_5, %c0_6] : memref<32x128xf32, #tpu.memory_space<vmem>>, vector<32x128xf32>
    %cst_7 = arith.constant dense<0.000000e+00> : vector<16x128xf32>
    %7 = tpu.matmul %0, %6, %cst_7 {dimension_numbers = #tpu.dot_dimension_numbers<[1], [0], [0], [1], [0, 0, 1, 1], [], []>} : vector<16x32xf32>, vector<32x128xf32>, vector<16x128xf32> -> vector<16x128xf32>
    %c0_8 = arith.constant 0 : index
    %c0_9 = arith.constant 0 : index
    %8 = vector.load %arg6[%c0_8, %c0_9] : memref<1x128xf32, #tpu.memory_space<vmem>>, vector<1x128xf32>
    %9 = vector.broadcast %8 : vector<1x128xf32> to vector<16x128xf32>
    %10 = arith.addf %7, %9 : vector<16x128xf32>
    %11 = arith.negf %5 : vector<16x128xf32>
    %12 = math.exp %11 : vector<16x128xf32>
    %cst_10 = arith.constant 1.000000e+00 : f32
    %13 = vector.broadcast %cst_10 : f32 to vector<16x128xf32>
    %14 = arith.addf %13, %12 : vector<16x128xf32>
    %15 = arith.divf %13, %14 : vector<16x128xf32>
    %16 = arith.mulf %5, %15 : vector<16x128xf32>
    %17 = arith.mulf %16, %10 : vector<16x128xf32>
    %c0_11 = arith.constant 0 : index
    %c0_12 = arith.constant 0 : index
    %18 = vector.load %arg7[%c0_11, %c0_12] : memref<16x128xf32, #tpu.memory_space<vmem>>, vector<16x128xf32>
    tpu.vector_store %arg7[%c0_11, %c0_12], %17 {strides = array<i32>} : memref<16x128xf32, #tpu.memory_space<vmem>>, vector<16x128xf32>,
    return
  }
  func.func @transform_0(%arg0: i32, %arg1: i32) -> (i32, i32) {
    %c0_i32 = arith.constant 0 : i32
    %c0_i32_0 = arith.constant 0 : i32
    return %arg1, %c0_i32 : i32, i32
  }
  func.func @transform_1(%arg0: i32, %arg1: i32) -> (i32, i32) {
    %c0_i32 = arith.constant 0 : i32
    %c0_i32_0 = arith.constant 0 : i32
    return %c0_i32, %arg0 : i32, i32
  }
  func.func @transform_2(%arg0: i32, %arg1: i32) -> (i32, i32) {
    %c1_i32 = arith.constant 1 : i32
    %0 = arith.addi %arg0, %c1_i32 : i32
    %c0_i32 = arith.constant 0 : i32
    %c0_i32_0 = arith.constant 0 : i32
    return %c0_i32, %0 : i32, i32
  }
  func.func @transform_3(%arg0: i32, %arg1: i32) -> (i32, i32) {
    %c0_i32 = arith.constant 0 : i32
    %c0_i32_0 = arith.constant 0 : i32
    return %c0_i32, %arg0 : i32, i32
  }
  func.func @transform_4(%arg0: i32, %arg1: i32) -> (i32, i32) {
    %c1_i32 = arith.constant 1 : i32
    %0 = arith.addi %arg0, %c1_i32 : i32
    %c0_i32 = arith.constant 0 : i32
    %c0_i32_0 = arith.constant 0 : i32
    return %c0_i32, %0 : i32, i32
  }
  func.func @transform_5(%arg0: i32, %arg1: i32) -> (i32, i32) {
    %c0_i32 = arith.constant 0 : i32
    return %arg1, %arg0 : i32, i32
  }
}

</mosaic_0001>

<llo_original>
// kernel: tpu_custom_call.1
$region0: #{tpu_custom_call.1}
  #allocation0 [shape = 'u32[]', space=smem, size = 0x4, offset = 0x4, fixed_abs, tag = 'smem constant byte address 0x4 - core index']
  #allocation1 [shape = 'u32[144,128]{1,0:T(1,128)}', space=vmem, size = 0x12000, scoped, tag = 'internal scratch']
  %s0 = inlined_call_operand.hbm [shape: f32[16,32], index: 0, kind: input, shape index: {}]
  %s1 = inlined_call_operand.hbm [shape: f32[32,256], index: 1, kind: input, shape index: {}]
  %s2 = inlined_call_operand.hbm [shape: f32[32,256], index: 2, kind: input, shape index: {}]
  %s3 = inlined_call_operand.vmem [shape: f32[1,256], index: 3, kind: input, shape index: {}]
  %s4 = inlined_call_operand.vmem [shape: f32[1,256], index: 4, kind: input, shape index: {}]
  %s5 = inlined_call_operand.hbm [shape: f32[16,128], index: 5, kind: output, shape index: {}]
  %s6 = sld [smem:[#allocation0]]
  $region42: #{tpu_custom_call.1} parent=0
    _
  %s8 = ssub.s32 1, %s6
  %s9 = scalar_select 0, %s8, %s6
  $region1: #{tpu_custom_call.1} parent=0
    #allocation2 [shape = 'u8[8192]{0}', space=vmem, size = 0x2000, scoped, tag = 'input window, operand 0, single buffered']
    #allocation3 [shape = 's32[1]{0}', space=sflag, size = 0x4, scoped, tag = 'scoped memory for tpu_custom_call.1']
    #allocation4 [shape = 's32[1]{0}', space=sflag, size = 0x4, scoped, tag = 'scoped memory for tpu_custom_call.1']
    #allocation5 [shape = 'u8[16384]{0}', space=vmem, size = 0x4000, scoped, tag = 'input window, operand 1, single buffered']
    #allocation6 [shape = 's32[1]{0}', space=sflag, size = 0x4, scoped, tag = 'scoped memory for tpu_custom_call.1']
    #allocation7 [shape = 'u8[16384]{0}', space=vmem, size = 0x4000, scoped, tag = 'input window, operand 2, single buffered']
    #allocation8 [shape = 'u8[8192]{0}', space=vmem, size = 0x2000, scoped, tag = 'output window, operand 0, single buffered']
    %10 = vsyncpa [#allocation3], 0
    %11 = vsyncpa [#allocation6], 0
    %12 = vsyncpa [#allocation4], 0
    // Predicated region
    $region2: #{tpu_custom_call.1} parent=1 // pred_check
      _
    $region3: #{tpu_custom_call.1} parent=1 // pred_check_branch
      %14 = sbr.rel (0) target = $region5
    $region4: #{tpu_custom_call.1} parent=1 // pred_region
      %s16 = ssub.s32 256, 256
      %17 = vsyncadd [#allocation3], %s16
      %s18 = sshll.u32 [#allocation2], 4
      %s19 = int_to_ptr.vmem [resolvable:$true] %s18
      %24 = dma.hbm_to_vmem [thread:$0]  %s0, 256, %s19, [#allocation3], 128, 128, 8
    $region5: #{tpu_custom_call.1} parent=1 // pred_fallthru
      _
    // Predicated region
    $region6: #{tpu_custom_call.1} parent=1 // pred_check
      _
    $region7: #{tpu_custom_call.1} parent=1 // pred_check_branch
      %26 = sbr.rel (0) target = $region9
    $region8: #{tpu_custom_call.1} parent=1 // pred_region
      %s28 = ssub.s32 512, 512
      %29 = vsyncadd [#allocation6], %s28
      %s30 = sshll.u32 [#allocation5], 4
      %s31 = int_to_ptr.vmem [resolvable:$true] %s30
      %36 = dma.hbm_to_vmem [thread:$0]  %s1, 512, %s31, [#allocation6], 256, 128, 8
    $region9: #{tpu_custom_call.1} parent=1 // pred_fallthru
      _
    // Predicated region
    $region10: #{tpu_custom_call.1} parent=1 // pred_check
      _
    $region11: #{tpu_custom_call.1} parent=1 // pred_check_branch
      %38 = sbr.rel (0) target = $region13
    $region12: #{tpu_custom_call.1} parent=1 // pred_region
      %s39 = sadd.s32 0, 1
      %s41 = ssub.s32 512, 512
      %42 = vsyncadd [#allocation6], %s41
      %s43 = smul.addr %s39, 128
      %s44 = scalar_lea.hbm %s2, %s43
      %s45 = sshll.u32 [#allocation7], 4
      %s46 = int_to_ptr.vmem [resolvable:$true] %s45
      %51 = dma.hbm_to_vmem [thread:$0]  %s44, 512, %s46, [#allocation6], 256, 128, 8
    $region13: #{tpu_custom_call.1} parent=1 // pred_fallthru
      _
    // Predicated region
    $region14: #{tpu_custom_call.1} parent=1 // pred_check
      _
    $region15: #{tpu_custom_call.1} parent=1 // pred_check_branch
      %53 = sbr.rel (0) target = $region17
    $region16: #{tpu_custom_call.1} parent=1 // pred_region
      _
    $region17: #{tpu_custom_call.1} parent=1 // pred_fallthru
      _
    // Predicated region
    $region18: #{tpu_custom_call.1} parent=1 // pred_check
      _
    $region19: #{tpu_custom_call.1} parent=1 // pred_check_branch
      %55 = sbr.rel (0) target = $region21
    $region20: #{tpu_custom_call.1} parent=1 // pred_region
      %s56 = sadd.s32 0, 1
      %p57 = scmp.lt.s32.totalorder %s56, 1
      %s58 = scalar_select %p57, %s56, 1
      %s59 = scalar_lea.vmem %s4, %s58
      %s60 = sadd.s32 0, 1
    $region21: #{tpu_custom_call.1} parent=1 // pred_fallthru
      _
    // Predicated region
    $region22: #{tpu_custom_call.1} parent=1 // pred_check
      _
    $region23: #{tpu_custom_call.1} parent=1 // pred_check_branch
      %62 = sbr.rel (0) target = $region25
    $region24: #{tpu_custom_call.1} parent=1 // pred_region
      %63 = dma.done [#allocation3], 256
    $region25: #{tpu_custom_call.1} parent=1 // pred_fallthru
      _
    // Predicated region
    $region26: #{tpu_custom_call.1} parent=1 // pred_check
      _
    $region27: #{tpu_custom_call.1} parent=1 // pred_check_branch
      %65 = sbr.rel (0) target = $region29
    $region28: #{tpu_custom_call.1} parent=1 // pred_region
      %66 = dma.done [#allocation6], 512
    $region29: #{tpu_custom_call.1} parent=1 // pred_fallthru
      _
    // Predicated region
    $region30: #{tpu_custom_call.1} parent=1 // pred_check
      _
    $region31: #{tpu_custom_call.1} parent=1 // pred_check_branch
      %68 = sbr.rel (0) target = $region33
    $region32: #{tpu_custom_call.1} parent=1 // pred_region
      %69 = dma.done [#allocation6], 512
    $region33: #{tpu_custom_call.1} parent=1 // pred_fallthru
      _
    %s70 = sadd.s32 0, 1
    %p71 = scmp.lt.s32.totalorder %s70, 1
    %s72 = scalar_select %p71, %s70, 1
    %s73 = scalar_lea.vmem %s4, %s72
    %s74 = sadd.s32 0, 1
    %s75 = sadd.s32 0, 1
    %p76 = scmp.lt.s32.totalorder %s75, 1
    %s77 = scalar_select %p76, %s75, 1
    %s78 = scalar_lea.vmem %s4, %s77
    %s79 = sadd.s32 0, 1
    %v80 = vld [vmem:[#allocation2] sm:$0xff]
    %v81 = vld [vmem:[#allocation2 + $0x8] sm:$0xff]
    %v82 = vld [vmem:[#allocation5] sm:$0xff]
    %v83 = vld [vmem:[#allocation5 + $0x8] sm:$0xff]
    %v84 = vld [vmem:[#allocation5 + $0x10] sm:$0xff]
    %v85 = vld [vmem:[#allocation5 + $0x18] sm:$0xff]
    %v86 = vld [vmem:[%s3] sm:$0x1]
    %v88 = vlaneseq
    %v89 = vshrl.u32 %v88, 7
    %v90 = vsub.s32 0, %v89
    %v91 = vrot.slane %v86, %v90
    %vm93 = vcmask 261120
    %v95 = vsel %vm93, %v80, 0
    %v98 = vsel %vm93, %v81, 0
    %100 = vmatprep.subr.mxu0 0.0
    %101 = vmatpush1.msra.mxu0 %v82
    %102 = vmatprep.subr.mxu0 0.0
    %103 = vmatpush1.msra.mxu0 %v83
    %104 = vmatprep.subr.mxu0 0.0
    %105 = vmatpush1.msra.mxu0 %v84
    %106 = vmatprep.subr.mxu0 0.0
    %107 = vmatpush1.msra.mxu0 %v85
    %108 = vmatprep.subr.mxu0 0.0
    %109 = vmatpush1.msra.mxu0 0.0
    %110 = vmatprep.subr.mxu0 0.0
    %111 = vmatpush1.msra.mxu0 0.0
    %112 = vmatprep.subr.mxu0 0.0
    %113 = vmatpush1.msra.mxu0 0.0
    %114 = vmatprep.subr.mxu0 0.0
    %115 = vmatpush1.msra.mxu0 0.0
    %116 = vmatprep.subr.mxu0 0.0
    %117 = vmatpush1.msra.mxu0 0.0
    %118 = vmatprep.subr.mxu0 0.0
    %119 = vmatpush1.msra.mxu0 0.0
    %120 = vmatprep.subr.mxu0 0.0
    %121 = vmatpush1.msra.mxu0 0.0
    %122 = vmatprep.subr.mxu0 0.0
    %123 = vmatpush1.msra.mxu0 0.0
    %124 = vmatprep.subr.mxu0 0.0
    %125 = vmatpush1.msra.mxu0 0.0
    %126 = vmatprep.subr.mxu0 0.0
    %127 = vmatpush1.msra.mxu0 0.0
    %128 = vmatprep.subr.mxu0 0.0
    %129 = vmatpush1.msra.mxu0 0.0
    %130 = vmatprep.subr.mxu0 0.0
    %131 = vmatpush1.msra.mxu0 0.0
    %132 = vmatprep.subr.mxu0 0.0
    %133 = vmatpush1.msra.mxu0 0.0
    %134 = vmatprep.subr.mxu0 0.0
    %135 = vmatpush1.msra.mxu0 0.0
    %136 = vmatprep.subr.mxu0 0.0
    %137 = vmatpush1.msra.mxu0 0.0
    %138 = vmatprep.subr.mxu0 0.0
    %139 = vmatpush1.msra.mxu0 0.0
    %140 = vmatprep.subr.mxu0 0.0
    %141 = vmatpush1.msra.mxu0 0.0
    %142 = vmatprep.subr.mxu0 0.0
    %143 = vmatpush1.msra.mxu0 0.0
    %144 = vmatprep.subr.mxu0 0.0
    %145 = vmatpush1.msra.mxu0 0.0
    %146 = vmatprep.subr.mxu0 0.0
    %147 = vmatpush1.msra.mxu0 0.0
    %148 = vmatprep.subr.mxu0 0.0
    %149 = vmatpush1.msra.mxu0 0.0
    %150 = vmatprep.subr.mxu0 0.0
    %151 = vmatpush1.msra.mxu0 0.0
    %152 = vmatprep.subr.mxu0 0.0
    %153 = vmatpush1.msra.mxu0 0.0
    %154 = vmatprep.subr.mxu0 0.0
    %155 = vmatpush1.msra.mxu0 0.0
    %156 = vmatprep.subr.mxu0 0.0
    %157 = vmatpush1.msra.mxu0 0.0
    %158 = vmatprep.subr.mxu0 0.0
    %159 = vmatpush1.msra.mxu0 0.0
    %160 = vmatprep.subr.mxu0 0.0
    %161 = vmatpush1.msra.mxu0 0.0
    %162 = vmatprep.subr.mxu0 0.0
    %163 = vmatpush1.msra.mxu0 0.0
    %164 = vmatprep.mubr.f32.mxu0 0.0
    %165 = vmatmul.mubr.f32.gmra.mrb[0].mxu0 %v95
    %v166 = vpop.f32.mrb[0].mxu0
    %v167 = vadd.f32 %v91, %v166
    %v168 = vpop.f32.mrb[0].mxu0
    %169 = vmatprep.mubr.f32.mxu0 0.0
    %170 = vmatmul.mubr.f32.gmra.mrb[0].mxu0 %v98
    %v171 = vpop.f32.mrb[0].mxu0
    %v172 = vadd.f32 %v91, %v171
    %v173 = vpop.f32.mrb[0].mxu0
    %174 = vdwg.mxu0
    %v175 = vld [vmem:[#allocation7] sm:$0xff]
    %v176 = vld [vmem:[#allocation7 + $0x8] sm:$0xff]
    %v177 = vld [vmem:[#allocation7 + $0x10] sm:$0xff]
    %v178 = vld [vmem:[#allocation7 + $0x18] sm:$0xff]
    %v179 = vld [vmem:[%s78] sm:$0x1]
    %v181 = vlaneseq
    %v182 = vshrl.u32 %v181, 7
    %v183 = vsub.s32 0, %v182
    %v184 = vrot.slane %v179, %v183
    %186 = vmatprep.subr.mxu0 0.0
    %187 = vmatpush1.msra.mxu0 %v175
    %188 = vmatprep.subr.mxu0 0.0
    %189 = vmatpush1.msra.mxu0 %v176
    %190 = vmatprep.subr.mxu0 0.0
    %191 = vmatpush1.msra.mxu0 %v177
    %192 = vmatprep.subr.mxu0 0.0
    %193 = vmatpush1.msra.mxu0 %v178
    %194 = vmatprep.subr.mxu0 0.0
    %195 = vmatpush1.msra.mxu0 0.0
    %196 = vmatprep.subr.mxu0 0.0
    %197 = vmatpush1.msra.mxu0 0.0
    %198 = vmatprep.subr.mxu0 0.0
    %199 = vmatpush1.msra.mxu0 0.0
    %200 = vmatprep.subr.mxu0 0.0
    %201 = vmatpush1.msra.mxu0 0.0
    %202 = vmatprep.subr.mxu0 0.0
    %203 = vmatpush1.msra.mxu0 0.0
    %204 = vmatprep.subr.mxu0 0.0
    %205 = vmatpush1.msra.mxu0 0.0
    %206 = vmatprep.subr.mxu0 0.0
    %207 = vmatpush1.msra.mxu0 0.0
    %208 = vmatprep.subr.mxu0 0.0
    %209 = vmatpush1.msra.mxu0 0.0
    %210 = vmatprep.subr.mxu0 0.0
    %211 = vmatpush1.msra.mxu0 0.0
    %212 = vmatprep.subr.mxu0 0.0
    %213 = vmatpush1.msra.mxu0 0.0
    %214 = vmatprep.subr.mxu0 0.0
    %215 = vmatpush1.msra.mxu0 0.0
    %216 = vmatprep.subr.mxu0 0.0
    %217 = vmatpush1.msra.mxu0 0.0
    %218 = vmatprep.subr.mxu0 0.0
    %219 = vmatpush1.msra.mxu0 0.0
    %220 = vmatprep.subr.mxu0 0.0
    %221 = vmatpush1.msra.mxu0 0.0
    %222 = vmatprep.subr.mxu0 0.0
    %223 = vmatpush1.msra.mxu0 0.0
    %224 = vmatprep.subr.mxu0 0.0
    %225 = vmatpush1.msra.mxu0 0.0
    %226 = vmatprep.subr.mxu0 0.0
    %227 = vmatpush1.msra.mxu0 0.0
    %228 = vmatprep.subr.mxu0 0.0
    %229 = vmatpush1.msra.mxu0 0.0
    %230 = vmatprep.subr.mxu0 0.0
    %231 = vmatpush1.msra.mxu0 0.0
    %232 = vmatprep.subr.mxu0 0.0
    %233 = vmatpush1.msra.mxu0 0.0
    %234 = vmatprep.subr.mxu0 0.0
    %235 = vmatpush1.msra.mxu0 0.0
    %236 = vmatprep.subr.mxu0 0.0
    %237 = vmatpush1.msra.mxu0 0.0
    %238 = vmatprep.subr.mxu0 0.0
    %239 = vmatpush1.msra.mxu0 0.0
    %240 = vmatprep.subr.mxu0 0.0
    %241 = vmatpush1.msra.mxu0 0.0
    %242 = vmatprep.subr.mxu0 0.0
    %243 = vmatpush1.msra.mxu0 0.0
    %244 = vmatprep.subr.mxu0 0.0
    %245 = vmatpush1.msra.mxu0 0.0
    %246 = vmatprep.subr.mxu0 0.0
    %247 = vmatpush1.msra.mxu0 0.0
    %248 = vmatprep.subr.mxu0 0.0
    %249 = vmatpush1.msra.mxu0 0.0
    %250 = vmatprep.mubr.f32.mxu0 0.0
    %251 = vmatmul.mubr.f32.gmra.mrb[0].mxu0 %v95
    %v252 = vpop.f32.mrb[0].mxu0
    %v253 = vadd.f32 %v184, %v252
    %v254 = vpop.f32.mrb[0].mxu0
    %255 = vmatprep.mubr.f32.mxu0 0.0
    %256 = vmatmul.mubr.f32.gmra.mrb[0].mxu0 %v98
    %v257 = vpop.f32.mrb[0].mxu0
    %v258 = vadd.f32 %v184, %v257
    %v259 = vpop.f32.mrb[0].mxu0
    %260 = vdwg.mxu0
    %v261 = vxor.u32 %v167, 2147483648
    %v262 = vxor.u32 %v172, 2147483648
    %v263 = vmul.f32 %v261, 1.442695
    %v264 = vpow.pop %v263
    %v265 = vmul.f32 %v262, 1.442695
    %v266 = vpow.pop %v265
    %v267 = vadd.f32 %v264, 1.0
    %v268 = vadd.f32 %v266, 1.0
    %v269 = vrcp.pop %v267
    %v270 = vmul.f32 1.0, %v269
    %v271 = vrcp.pop %v268
    %v272 = vmul.f32 1.0, %v271
    %v273 = vmul.f32 %v167, %v270
    %v274 = vmul.f32 %v172, %v272
    %v275 = vmul.f32 %v273, %v253
    %v276 = vmul.f32 %v274, %v258
    %277 = vst [vmem:[#allocation8] sm:$0xff] %v275
    %278 = vst [vmem:[#allocation8 + $0x8] sm:$0xff] %v276
    // Predicated region
    $region34: #{tpu_custom_call.1} parent=1 // pred_check
      _
    $region35: #{tpu_custom_call.1} parent=1 // pred_check_branch
      %280 = sbr.rel (0) target = $region37
    $region36: #{tpu_custom_call.1} parent=1 // pred_region
      %s282 = ssub.s32 256, 256
      %283 = vsyncadd [#allocation4], %s282
      %s284 = sshll.u32 [#allocation8], 4
      %s285 = int_to_ptr.vmem [resolvable:$true] %s284
      %290 = dma.vmem_to_hbm [thread:$0]  %s285, 256, %s5, [#allocation4], 128, 128, 8
    $region37: #{tpu_custom_call.1} parent=1 // pred_fallthru
      _
    // Predicated region
    $region38: #{tpu_custom_call.1} parent=1 // pred_check
      _
    $region39: #{tpu_custom_call.1} parent=1 // pred_check_branch
      %292 = sbr.rel (0) target = $region41
    $region40: #{tpu_custom_call.1} parent=1 // pred_region
      %293 = dma.done [#allocation4], 256
    $region41: #{tpu_custom_call.1} parent=1 // pred_fallthru
      _
    %294 = vsyncpa [#allocation3], 1
    %295 = vsyncpa [#allocation6], 1
    %296 = vsyncpa [#allocation4], 1

</llo_original>
